<compile_context>
chip_gen: v6e
topology: v6e:2x2x1
jax: 0.10.0
libtpu: 0.0.40
codegen_flags: <defaults>
</compile_context>

<pallas_src>
import jax
import jax.numpy as jnp
from jax import lax
from jax.experimental import pallas as pl
from jax.experimental.pallas import tpu as pltpu


def _round_up(x, m):
    return ((x + m - 1) // m) * m


def _embedding_kernel(ids_ref, table_ref, out_ref):
    # ids_ref   : (TN, 3) int32  -- word / pos1 / pos2 ids, offsets pre-added
    # table_ref : (V_pad, d_total) f32 block-diagonal fused embedding table
    # out_ref   : (TN, d_total) f32 concatenated embeddings (lane-dense)
    ids = ids_ref[...]                                   # (TN, 3)
    tn = ids.shape[0]
    v_pad = table_ref.shape[0]

    iota = lax.broadcasted_iota(jnp.int32, (tn, v_pad), 1)
    # Combined one-hot: each row has exactly three ones, one per disjoint
    # table block, so a single matmul yields the concatenated embedding.
    onehot = ((ids[:, 0:1] == iota)
              | (ids[:, 1:2] == iota)
              | (ids[:, 2:3] == iota)).astype(table_ref.dtype)

    out_ref[...] = jnp.dot(onehot, table_ref[...],
                           preferred_element_type=jnp.float32
                           ).astype(out_ref.dtype)


def embedding_forward(word, position1, position2,
                      word_vector, pos1_vector, pos2_vector):
    bag_size, seq_len = word.shape
    n = bag_size * seq_len

    vw, dw = word_vector.shape
    v1, d1 = pos1_vector.shape
    v2, d2 = pos2_vector.shape
    d_total = dw + d1 + d2
    v_total = vw + v1 + v2
    v_pad = _round_up(v_total, 128)                      # 224 -> 256

    # --- Fused block-diagonal table (built once per call; in a real model
    #     this would be constructed at init and reused). -------------------
    dtype = word_vector.dtype
    table = jnp.zeros((v_pad, d_total), dtype)
    table = table.at[:vw, :dw].set(word_vector)
    table = table.at[vw:vw + v1, dw:dw + d1].set(pos1_vector)
    table = table.at[vw + v1:vw + v1 + v2, dw + d1:].set(pos2_vector)

    # --- Packed ids with per-table offsets added. ------------------------
    ids = jnp.stack(
        [word.reshape(-1).astype(jnp.int32),
         position1.reshape(-1).astype(jnp.int32) + vw,
         position2.reshape(-1).astype(jnp.int32) + vw + v1],
        axis=-1)                                          # (n, 3)

    # --- Tile N: block 256 at large N, else round N up to a sublane mult. --
    tn = 256 if n >= 256 else _round_up(n, 8)
    n_pad = _round_up(n, tn)
    if n_pad != n:
        ids = jnp.pad(ids, ((0, n_pad - n), (0, 0)))      # padded rows discarded

    out_flat = pl.pallas_call(
        _embedding_kernel,
        out_shape=jax.ShapeDtypeStruct((n_pad, d_total), dtype),
        grid=(n_pad // tn,),
        in_specs=[
            pl.BlockSpec((tn, 3), lambda i: (i, 0)),
            pl.BlockSpec((v_pad, d_total), lambda i: (0, 0)),
        ],
        out_specs=pl.BlockSpec((tn, d_total), lambda i: (i, 0)),
        compiler_params=pltpu.CompilerParams(
            dimension_semantics=("parallel",)),
    )(ids, table)

    # unsqueeze(1) + restore (bag_size, seq_len) axes
    return out_flat[:n].reshape(bag_size, 1, seq_len, d_total)


if __name__ == "__main__":
    key = jax.random.PRNGKey(0)
    k_w, k_p1, k_p2, k_iw, k_i1, k_i2 = jax.random.split(key, 6)

    # deterministic "pretrained" embedding tables
    word_vocab, word_dim = 100, 48
    pos_vocab, pos_dim = 62, 40          # d_total = 48 + 40 + 40 = 128
    word_vector = jax.random.normal(k_w, (word_vocab, word_dim), jnp.float32)
    pos1_vector = jax.random.normal(k_p1, (pos_vocab, pos_dim), jnp.float32)
    pos2_vector = jax.random.normal(k_p2, (pos_vocab, pos_dim), jnp.float32)

    # inputs: (bag_size, seq_len) integer ids
    bag_size, seq_len = 4, 16
    word = jax.random.randint(k_iw, (bag_size, seq_len), 0, word_vocab, jnp.int32)
    position1 = jax.random.randint(k_i1, (bag_size, seq_len), 0, pos_vocab, jnp.int32)
    position2 = jax.random.randint(k_i2, (bag_size, seq_len), 0, pos_vocab, jnp.int32)

    out = embedding_forward(word, position1, position2,
                            word_vector, pos1_vector, pos2_vector)
    out = jax.block_until_ready(out)

    # pure-JAX reference of the PyTorch forward
    ref = jnp.concatenate(
        [word_vector[word], pos1_vector[position1], pos2_vector[position2]],
        axis=2)[:, None, :, :]

    assert out.shape == (bag_size, 1, seq_len, word_dim + 2 * pos_dim), out.shape
    assert out.dtype == jnp.float32
    assert jnp.allclose(out, ref, atol=1e-6), "mismatch vs reference"
    print("KERNEL_OK")
</pallas_src>

<mosaic_0001>
module attributes {stable_mosaic.version = 11 : i64} {
  func.func @_embedding_kernel(%arg0: i32, %arg1: memref<64x3xi32, #tpu.memory_space<vmem>>, %arg2: memref<256x128xf32, #tpu.memory_space<vmem>>, %arg3: memref<64x128xf32, #tpu.memory_space<vmem>>) attributes {dimension_semantics = [#tpu.dimension_semantics<parallel>], iteration_bounds = array<i64: 1>, scalar_prefetch = 0 : i64, scratch_operands = 0 : i64, tpu.core_type = #tpu.core_type<tc>, window_params = [{transform_indices = @transform_0, window_bounds = array<i64: 64, 3>}, {pipeline_mode = #tpu.pipeline_mode<synchronous>, transform_indices = @transform_1, window_bounds = array<i64: 256, 128>}, {transform_indices = @transform_2, window_bounds = array<i64: 64, 128>}]} {
    %c0 = arith.constant 0 : index
    %c0_0 = arith.constant 0 : index
    %0 = vector.load %arg1[%c0, %c0_0] : memref<64x3xi32, #tpu.memory_space<vmem>>, vector<64x3xi32>
    %1 = tpu.iota {dimensions = array<i32: 1>} : vector<64x256xi32>
    %2 = vector.extract_strided_slice %0 {offsets = [0, 0], sizes = [64, 1], strides = [1, 1]} : vector<64x3xi32> to vector<64x1xi32>
    %3 = vector.broadcast %2 : vector<64x1xi32> to vector<64x256xi32>
    %4 = arith.cmpi eq, %3, %1 : vector<64x256xi32>
    %5 = vector.extract_strided_slice %0 {offsets = [0, 1], sizes = [64, 1], strides = [1, 1]} : vector<64x3xi32> to vector<64x1xi32>
    %6 = vector.broadcast %5 : vector<64x1xi32> to vector<64x256xi32>
    %7 = arith.cmpi eq, %6, %1 : vector<64x256xi32>
    %8 = arith.ori %4, %7 : vector<64x256xi1>
    %9 = vector.extract_strided_slice %0 {offsets = [0, 2], sizes = [64, 1], strides = [1, 1]} : vector<64x3xi32> to vector<64x1xi32>
    %10 = vector.broadcast %9 : vector<64x1xi32> to vector<64x256xi32>
    %11 = arith.cmpi eq, %10, %1 : vector<64x256xi32>
    %12 = arith.ori %8, %11 : vector<64x256xi1>
    %13 = arith.extui %12 : vector<64x256xi1> to vector<64x256xi32>
    %14 = arith.sitofp %13 : vector<64x256xi32> to vector<64x256xf32>
    %c0_1 = arith.constant 0 : index
    %c0_2 = arith.constant 0 : index
    %15 = vector.load %arg2[%c0_1, %c0_2] : memref<256x128xf32, #tpu.memory_space<vmem>>, vector<256x128xf32>
    %cst = arith.constant dense<0.000000e+00> : vector<64x128xf32>
    %16 = tpu.matmul %14, %15, %cst {dimension_numbers = #tpu.dot_dimension_numbers<[1], [0], [0], [1], [0, 0, 1, 1], [], []>} : vector<64x256xf32>, vector<256x128xf32>, vector<64x128xf32> -> vector<64x128xf32>
    %c0_3 = arith.constant 0 : index
    %c0_4 = arith.constant 0 : index
    %17 = vector.load %arg3[%c0_3, %c0_4] : memref<64x128xf32, #tpu.memory_space<vmem>>, vector<64x128xf32>
    tpu.vector_store %arg3[%c0_3, %c0_4], %16 {strides = array<i32>} : memref<64x128xf32, #tpu.memory_space<vmem>>, vector<64x128xf32>,
    return
  }
  func.func @transform_0(%arg0: i32) -> (i32, i32) {
    %c0_i32 = arith.constant 0 : i32
    %c0_i32_0 = arith.constant 0 : i32
    return %arg0, %c0_i32 : i32, i32
  }
  func.func @transform_1(%arg0: i32) -> (i32, i32) {
    %c0_i32 = arith.constant 0 : i32
    %c0_i32_0 = arith.constant 0 : i32
    %c0_i32_1 = arith.constant 0 : i32
    return %c0_i32, %c0_i32_0 : i32, i32
  }
  func.func @transform_2(%arg0: i32) -> (i32, i32) {
    %c0_i32 = arith.constant 0 : i32
    %c0_i32_0 = arith.constant 0 : i32
    return %arg0, %c0_i32 : i32, i32
  }
}

</mosaic_0001>

<llo_original>
// kernel: tpu_custom_call.1
$region0: #{tpu_custom_call.1}
  #allocation0 [shape = 'u32[]', space=smem, size = 0x4, offset = 0x4, fixed_abs, tag = 'smem constant byte address 0x4 - core index']
  #allocation1 [shape = 'u32[144,128]{1,0:T(1,128)}', space=vmem, size = 0x12000, scoped, tag = 'internal scratch']
  %s0 = inlined_call_operand.vmem [shape: s32[64,3], index: 0, kind: input, shape index: {}]
  %s1 = inlined_call_operand.hbm [shape: f32[256,128], index: 1, kind: input, shape index: {}]
  %s2 = inlined_call_operand.hbm [shape: f32[64,128], index: 2, kind: output, shape index: {}]
  %s3 = sld [smem:[#allocation0]]
  $region22: #{tpu_custom_call.1} parent=0
    _
  %s5 = ssub.s32 1, %s3
  %s6 = scalar_select 0, %s5, %s3
  $region1: #{tpu_custom_call.1} parent=0
    #allocation2 [shape = 'u8[131072]{0}', space=vmem, size = 0x20000, scoped, tag = 'input window, operand 1, single buffered']
    #allocation3 [shape = 's32[1]{0}', space=sflag, size = 0x4, scoped, tag = 'scoped memory for tpu_custom_call.1']
    #allocation4 [shape = 's32[1]{0}', space=sflag, size = 0x4, scoped, tag = 'scoped memory for tpu_custom_call.1']
    #allocation5 [shape = 'u8[32768]{0}', space=vmem, size = 0x8000, scoped, tag = 'output window, operand 0, single buffered']
    %7 = vsyncpa [#allocation3], 0
    %8 = vsyncpa [#allocation4], 0
    // Predicated region
    $region2: #{tpu_custom_call.1} parent=1 // pred_check
      _
    $region3: #{tpu_custom_call.1} parent=1 // pred_check_branch
      %10 = sbr.rel (0) target = $region5
    $region4: #{tpu_custom_call.1} parent=1 // pred_region
      _
    $region5: #{tpu_custom_call.1} parent=1 // pred_fallthru
      _
    // Predicated region
    $region6: #{tpu_custom_call.1} parent=1 // pred_check
      _
    $region7: #{tpu_custom_call.1} parent=1 // pred_check_branch
      %12 = sbr.rel (0) target = $region9
    $region8: #{tpu_custom_call.1} parent=1 // pred_region
      %s14 = ssub.s32 4096, 4096
      %15 = vsyncadd [#allocation3], %s14
      %s16 = sshll.u32 [#allocation2], 4
      %s17 = int_to_ptr.vmem [resolvable:$true] %s16
      %22 = dma.hbm_to_vmem [thread:$0]  %s1, 4096, %s17, [#allocation3], 128, 128, 8
    $region9: #{tpu_custom_call.1} parent=1 // pred_fallthru
      _
    // Predicated region
    $region10: #{tpu_custom_call.1} parent=1 // pred_check
      _
    $region11: #{tpu_custom_call.1} parent=1 // pred_check_branch
      %24 = sbr.rel (0) target = $region13
    $region12: #{tpu_custom_call.1} parent=1 // pred_region
      %25 = dma.done [#allocation3], 4096
    $region13: #{tpu_custom_call.1} parent=1 // pred_fallthru
      _
    %v26 = vld [vmem:[%s0] sm:$0xff]
    %v27 = vld [vmem:[%s0 + $0x8] sm:$0xff]
    %v28 = vld [vmem:[%s0 + $0x10] sm:$0xff]
    %v29 = vld [vmem:[%s0 + $0x18] sm:$0xff]
    %v30 = vld [vmem:[%s0 + $0x20] sm:$0xff]
    %v31 = vld [vmem:[%s0 + $0x28] sm:$0xff]
    %v32 = vld [vmem:[%s0 + $0x30] sm:$0xff]
    %v33 = vld [vmem:[%s0 + $0x38] sm:$0xff]
    %v34 = vlaneseq
    %v35 = vand.u32 %v34, 127
    %v36 = vadd.s32 %v35, 128
    %37 = vset.pattern.permute.xlu0 0
    %38 = vperm.xlu0 %37, %v26
    %v39 = vpop.permute.xlu0 %38
    %40 = vset.pattern.permute.xlu0 0
    %41 = vperm.xlu0 %40, %v27
    %v42 = vpop.permute.xlu0 %41
    %43 = vset.pattern.permute.xlu0 0
    %44 = vperm.xlu0 %43, %v28
    %v45 = vpop.permute.xlu0 %44
    %46 = vset.pattern.permute.xlu0 0
    %47 = vperm.xlu0 %46, %v29
    %v48 = vpop.permute.xlu0 %47
    %49 = vset.pattern.permute.xlu0 0
    %50 = vperm.xlu0 %49, %v30
    %v51 = vpop.permute.xlu0 %50
    %52 = vset.pattern.permute.xlu0 0
    %53 = vperm.xlu0 %52, %v31
    %v54 = vpop.permute.xlu0 %53
    %55 = vset.pattern.permute.xlu0 0
    %56 = vperm.xlu0 %55, %v32
    %v57 = vpop.permute.xlu0 %56
    %58 = vset.pattern.permute.xlu0 0
    %59 = vperm.xlu0 %58, %v33
    %v60 = vpop.permute.xlu0 %59
    %vm61 = vcmp.eq.s32.totalorder %v39, %v35
    %vm62 = vcmp.eq.s32.totalorder %v39, %v36
    %vm63 = vcmp.eq.s32.totalorder %v42, %v35
    %vm64 = vcmp.eq.s32.totalorder %v42, %v36
    %vm65 = vcmp.eq.s32.totalorder %v45, %v35
    %vm66 = vcmp.eq.s32.totalorder %v45, %v36
    %vm67 = vcmp.eq.s32.totalorder %v48, %v35
    %vm68 = vcmp.eq.s32.totalorder %v48, %v36
    %vm69 = vcmp.eq.s32.totalorder %v51, %v35
    %vm70 = vcmp.eq.s32.totalorder %v51, %v36
    %vm71 = vcmp.eq.s32.totalorder %v54, %v35
    %vm72 = vcmp.eq.s32.totalorder %v54, %v36
    %vm73 = vcmp.eq.s32.totalorder %v57, %v35
    %vm74 = vcmp.eq.s32.totalorder %v57, %v36
    %vm75 = vcmp.eq.s32.totalorder %v60, %v35
    %vm76 = vcmp.eq.s32.totalorder %v60, %v36
    %77 = vset.pattern.permute.xlu0 1
    %78 = vperm.xlu0 %77, %v26
    %v79 = vpop.permute.xlu0 %78
    %80 = vset.pattern.permute.xlu0 1
    %81 = vperm.xlu0 %80, %v27
    %v82 = vpop.permute.xlu0 %81
    %83 = vset.pattern.permute.xlu0 1
    %84 = vperm.xlu0 %83, %v28
    %v85 = vpop.permute.xlu0 %84
    %86 = vset.pattern.permute.xlu0 1
    %87 = vperm.xlu0 %86, %v29
    %v88 = vpop.permute.xlu0 %87
    %89 = vset.pattern.permute.xlu0 1
    %90 = vperm.xlu0 %89, %v30
    %v91 = vpop.permute.xlu0 %90
    %92 = vset.pattern.permute.xlu0 1
    %93 = vperm.xlu0 %92, %v31
    %v94 = vpop.permute.xlu0 %93
    %95 = vset.pattern.permute.xlu0 1
    %96 = vperm.xlu0 %95, %v32
    %v97 = vpop.permute.xlu0 %96
    %98 = vset.pattern.permute.xlu0 1
    %99 = vperm.xlu0 %98, %v33
    %v100 = vpop.permute.xlu0 %99
    %vm101 = vcmp.eq.s32.totalorder %v79, %v35
    %vm102 = vcmp.eq.s32.totalorder %v79, %v36
    %vm103 = vcmp.eq.s32.totalorder %v82, %v35
    %vm104 = vcmp.eq.s32.totalorder %v82, %v36
    %vm105 = vcmp.eq.s32.totalorder %v85, %v35
    %vm106 = vcmp.eq.s32.totalorder %v85, %v36
    %vm107 = vcmp.eq.s32.totalorder %v88, %v35
    %vm108 = vcmp.eq.s32.totalorder %v88, %v36
    %vm109 = vcmp.eq.s32.totalorder %v91, %v35
    %vm110 = vcmp.eq.s32.totalorder %v91, %v36
    %vm111 = vcmp.eq.s32.totalorder %v94, %v35
    %vm112 = vcmp.eq.s32.totalorder %v94, %v36
    %vm113 = vcmp.eq.s32.totalorder %v97, %v35
    %vm114 = vcmp.eq.s32.totalorder %v97, %v36
    %vm115 = vcmp.eq.s32.totalorder %v100, %v35
    %vm116 = vcmp.eq.s32.totalorder %v100, %v36
    %vm117 = vmor %vm61, %vm101
    %vm118 = vmor %vm62, %vm102
    %vm119 = vmor %vm63, %vm103
    %vm120 = vmor %vm64, %vm104
    %vm121 = vmor %vm65, %vm105
    %vm122 = vmor %vm66, %vm106
    %vm123 = vmor %vm67, %vm107
    %vm124 = vmor %vm68, %vm108
    %vm125 = vmor %vm69, %vm109
    %vm126 = vmor %vm70, %vm110
    %vm127 = vmor %vm71, %vm111
    %vm128 = vmor %vm72, %vm112
    %vm129 = vmor %vm73, %vm113
    %vm130 = vmor %vm74, %vm114
    %vm131 = vmor %vm75, %vm115
    %vm132 = vmor %vm76, %vm116
    %133 = vset.pattern.permute.xlu0 2
    %134 = vperm.xlu0 %133, %v26
    %v135 = vpop.permute.xlu0 %134
    %136 = vset.pattern.permute.xlu0 2
    %137 = vperm.xlu0 %136, %v27
    %v138 = vpop.permute.xlu0 %137
    %139 = vset.pattern.permute.xlu0 2
    %140 = vperm.xlu0 %139, %v28
    %v141 = vpop.permute.xlu0 %140
    %142 = vset.pattern.permute.xlu0 2
    %143 = vperm.xlu0 %142, %v29
    %v144 = vpop.permute.xlu0 %143
    %145 = vset.pattern.permute.xlu0 2
    %146 = vperm.xlu0 %145, %v30
    %v147 = vpop.permute.xlu0 %146
    %148 = vset.pattern.permute.xlu0 2
    %149 = vperm.xlu0 %148, %v31
    %v150 = vpop.permute.xlu0 %149
    %151 = vset.pattern.permute.xlu0 2
    %152 = vperm.xlu0 %151, %v32
    %v153 = vpop.permute.xlu0 %152
    %154 = vset.pattern.permute.xlu0 2
    %155 = vperm.xlu0 %154, %v33
    %v156 = vpop.permute.xlu0 %155
    %vm157 = vcmp.eq.s32.totalorder %v135, %v35
    %vm158 = vcmp.eq.s32.totalorder %v135, %v36
    %vm159 = vcmp.eq.s32.totalorder %v138, %v35
    %vm160 = vcmp.eq.s32.totalorder %v138, %v36
    %vm161 = vcmp.eq.s32.totalorder %v141, %v35
    %vm162 = vcmp.eq.s32.totalorder %v141, %v36
    %vm163 = vcmp.eq.s32.totalorder %v144, %v35
    %vm164 = vcmp.eq.s32.totalorder %v144, %v36
    %vm165 = vcmp.eq.s32.totalorder %v147, %v35
    %vm166 = vcmp.eq.s32.totalorder %v147, %v36
    %vm167 = vcmp.eq.s32.totalorder %v150, %v35
    %vm168 = vcmp.eq.s32.totalorder %v150, %v36
    %vm169 = vcmp.eq.s32.totalorder %v153, %v35
    %vm170 = vcmp.eq.s32.totalorder %v153, %v36
    %vm171 = vcmp.eq.s32.totalorder %v156, %v35
    %vm172 = vcmp.eq.s32.totalorder %v156, %v36
    %vm173 = vmor %vm117, %vm157
    %vm174 = vmor %vm118, %vm158
    %vm175 = vmor %vm119, %vm159
    %vm176 = vmor %vm120, %vm160
    %vm177 = vmor %vm121, %vm161
    %vm178 = vmor %vm122, %vm162
    %vm179 = vmor %vm123, %vm163
    %vm180 = vmor %vm124, %vm164
    %vm181 = vmor %vm125, %vm165
    %vm182 = vmor %vm126, %vm166
    %vm183 = vmor %vm127, %vm167
    %vm184 = vmor %vm128, %vm168
    %vm185 = vmor %vm129, %vm169
    %vm186 = vmor %vm130, %vm170
    %vm187 = vmor %vm131, %vm171
    %vm188 = vmor %vm132, %vm172
    %v189 = vsel %vm173, 1, 0
    %v190 = vsel %vm174, 1, 0
    %v191 = vsel %vm175, 1, 0
    %v192 = vsel %vm176, 1, 0
    %v193 = vsel %vm177, 1, 0
    %v194 = vsel %vm178, 1, 0
    %v195 = vsel %vm179, 1, 0
    %v196 = vsel %vm180, 1, 0
    %v197 = vsel %vm181, 1, 0
    %v198 = vsel %vm182, 1, 0
    %v199 = vsel %vm183, 1, 0
    %v200 = vsel %vm184, 1, 0
    %v201 = vsel %vm185, 1, 0
    %v202 = vsel %vm186, 1, 0
    %v203 = vsel %vm187, 1, 0
    %v204 = vsel %vm188, 1, 0
    %v205 = vcvt.s32.f32 %v189
    %v206 = vcvt.s32.f32 %v190
    %v207 = vcvt.s32.f32 %v191
    %v208 = vcvt.s32.f32 %v192
    %v209 = vcvt.s32.f32 %v193
    %v210 = vcvt.s32.f32 %v194
    %v211 = vcvt.s32.f32 %v195
    %v212 = vcvt.s32.f32 %v196
    %v213 = vcvt.s32.f32 %v197
    %v214 = vcvt.s32.f32 %v198
    %v215 = vcvt.s32.f32 %v199
    %v216 = vcvt.s32.f32 %v200
    %v217 = vcvt.s32.f32 %v201
    %v218 = vcvt.s32.f32 %v202
    %v219 = vcvt.s32.f32 %v203
    %v220 = vcvt.s32.f32 %v204
    %v221 = vld [vmem:[#allocation2] sm:$0xff]
    %v222 = vld [vmem:[#allocation2 + $0x8] sm:$0xff]
    %v223 = vld [vmem:[#allocation2 + $0x10] sm:$0xff]
    %v224 = vld [vmem:[#allocation2 + $0x18] sm:$0xff]
    %v225 = vld [vmem:[#allocation2 + $0x20] sm:$0xff]
    %v226 = vld [vmem:[#allocation2 + $0x28] sm:$0xff]
    %v227 = vld [vmem:[#allocation2 + $0x30] sm:$0xff]
    %v228 = vld [vmem:[#allocation2 + $0x38] sm:$0xff]
    %v229 = vld [vmem:[#allocation2 + $0x40] sm:$0xff]
    %v230 = vld [vmem:[#allocation2 + $0x48] sm:$0xff]
    %v231 = vld [vmem:[#allocation2 + $0x50] sm:$0xff]
    %v232 = vld [vmem:[#allocation2 + $0x58] sm:$0xff]
    %v233 = vld [vmem:[#allocation2 + $0x60] sm:$0xff]
    %v234 = vld [vmem:[#allocation2 + $0x68] sm:$0xff]
    %v235 = vld [vmem:[#allocation2 + $0x70] sm:$0xff]
    %v236 = vld [vmem:[#allocation2 + $0x78] sm:$0xff]
    %v237 = vld [vmem:[#allocation2 + $0x80] sm:$0xff]
    %v238 = vld [vmem:[#allocation2 + $0x88] sm:$0xff]
    %v239 = vld [vmem:[#allocation2 + $0x90] sm:$0xff]
    %v240 = vld [vmem:[#allocation2 + $0x98] sm:$0xff]
    %v241 = vld [vmem:[#allocation2 + $0xa0] sm:$0xff]
    %v242 = vld [vmem:[#allocation2 + $0xa8] sm:$0xff]
    %v243 = vld [vmem:[#allocation2 + $0xb0] sm:$0xff]
    %v244 = vld [vmem:[#allocation2 + $0xb8] sm:$0xff]
    %v245 = vld [vmem:[#allocation2 + $0xc0] sm:$0xff]
    %v246 = vld [vmem:[#allocation2 + $0xc8] sm:$0xff]
    %v247 = vld [vmem:[#allocation2 + $0xd0] sm:$0xff]
    %v248 = vld [vmem:[#allocation2 + $0xd8] sm:$0xff]
    %v249 = vld [vmem:[#allocation2 + $0xe0] sm:$0xff]
    %v250 = vld [vmem:[#allocation2 + $0xe8] sm:$0xff]
    %v251 = vld [vmem:[#allocation2 + $0xf0] sm:$0xff]
    %v252 = vld [vmem:[#allocation2 + $0xf8] sm:$0xff]
    %253 = vmatprep.subr.mxu0 0.0
    %254 = vmatpush1.msra.mxu0 %v236
    %255 = vmatprep.subr.mxu0 0.0
    %256 = vmatpush1.msra.mxu0 %v235
    %257 = vmatprep.subr.mxu0 0.0
    %258 = vmatpush1.msra.mxu0 %v234
    %259 = vmatprep.subr.mxu0 0.0
    %260 = vmatpush1.msra.mxu0 %v233
    %261 = vmatprep.subr.mxu0 0.0
    %262 = vmatpush1.msra.mxu0 %v232
    %263 = vmatprep.subr.mxu0 0.0
    %264 = vmatpush1.msra.mxu0 %v231
    %265 = vmatprep.subr.mxu0 0.0
    %266 = vmatpush1.msra.mxu0 %v230
    %267 = vmatprep.subr.mxu0 0.0
    %268 = vmatpush1.msra.mxu0 %v229
    %269 = vmatprep.subr.mxu0 0.0
    %270 = vmatpush1.msra.mxu0 %v228
    %271 = vmatprep.subr.mxu0 0.0
    %272 = vmatpush1.msra.mxu0 %v227
    %273 = vmatprep.subr.mxu0 0.0
    %274 = vmatpush1.msra.mxu0 %v226
    %275 = vmatprep.subr.mxu0 0.0
    %276 = vmatpush1.msra.mxu0 %v225
    %277 = vmatprep.subr.mxu0 0.0
    %278 = vmatpush1.msra.mxu0 %v224
    %279 = vmatprep.subr.mxu0 0.0
    %280 = vmatpush1.msra.mxu0 %v223
    %281 = vmatprep.subr.mxu0 0.0
    %282 = vmatpush1.msra.mxu0 %v222
    %283 = vmatprep.subr.mxu0 0.0
    %284 = vmatpush1.msra.mxu0 %v221
    %285 = vmatprep.subr.mxu0 0.0
    %286 = vmatpush2.msra.mxu0 %v252
    %287 = vmatprep.subr.mxu0 0.0
    %288 = vmatpush2.msra.mxu0 %v251
    %289 = vmatprep.subr.mxu0 0.0
    %290 = vmatpush2.msra.mxu0 %v250
    %291 = vmatprep.subr.mxu0 0.0
    %292 = vmatpush2.msra.mxu0 %v249
    %293 = vmatprep.subr.mxu0 0.0
    %294 = vmatpush2.msra.mxu0 %v248
    %295 = vmatprep.subr.mxu0 0.0
    %296 = vmatpush2.msra.mxu0 %v247
    %297 = vmatprep.subr.mxu0 0.0
    %298 = vmatpush2.msra.mxu0 %v246
    %299 = vmatprep.subr.mxu0 0.0
    %300 = vmatpush2.msra.mxu0 %v245
    %301 = vmatprep.subr.mxu0 0.0
    %302 = vmatpush2.msra.mxu0 %v244
    %303 = vmatprep.subr.mxu0 0.0
    %304 = vmatpush2.msra.mxu0 %v243
    %305 = vmatprep.subr.mxu0 0.0
    %306 = vmatpush2.msra.mxu0 %v242
    %307 = vmatprep.subr.mxu0 0.0
    %308 = vmatpush2.msra.mxu0 %v241
    %309 = vmatprep.subr.mxu0 0.0
    %310 = vmatpush2.msra.mxu0 %v240
    %311 = vmatprep.subr.mxu0 0.0
    %312 = vmatpush2.msra.mxu0 %v239
    %313 = vmatprep.subr.mxu0 0.0
    %314 = vmatpush2.msra.mxu0 %v238
    %315 = vmatprep.subr.mxu0 0.0
    %316 = vmatpush2.msra.mxu0 %v237
    %317 = vmatprep.mubr.f32.mxu0 %v206
    %318 = vmatmul.mubr.f32.gmra.mxu0 %v205
    %v319 = vpop.f32.mrf.mxu0
    %v320 = vadd.f32 0.0, %v319
    %v321 = vpop.f32.mrf.mxu0
    %322 = vmatprep.mubr.f32.mxu0 %v208
    %323 = vmatmul.mubr.f32.gmra.mxu0 %v207
    %v324 = vpop.f32.mrf.mxu0
    %v325 = vadd.f32 0.0, %v324
    %v326 = vpop.f32.mrf.mxu0
    %327 = vmatprep.mubr.f32.mxu0 %v210
    %328 = vmatmul.mubr.f32.gmra.mxu0 %v209
    %v329 = vpop.f32.mrf.mxu0
    %v330 = vadd.f32 0.0, %v329
    %v331 = vpop.f32.mrf.mxu0
    %332 = vmatprep.mubr.f32.mxu0 %v212
    %333 = vmatmul.mubr.f32.gmra.mxu0 %v211
    %v334 = vpop.f32.mrf.mxu0
    %v335 = vadd.f32 0.0, %v334
    %v336 = vpop.f32.mrf.mxu0
    %337 = vmatprep.mubr.f32.mxu0 %v214
    %338 = vmatmul.mubr.f32.gmra.mxu0 %v213
    %v339 = vpop.f32.mrf.mxu0
    %v340 = vadd.f32 0.0, %v339
    %v341 = vpop.f32.mrf.mxu0
    %342 = vmatprep.mubr.f32.mxu0 %v216
    %343 = vmatmul.mubr.f32.gmra.mxu0 %v215
    %v344 = vpop.f32.mrf.mxu0
    %v345 = vadd.f32 0.0, %v344
    %v346 = vpop.f32.mrf.mxu0
    %347 = vmatprep.mubr.f32.mxu0 %v218
    %348 = vmatmul.mubr.f32.gmra.mxu0 %v217
    %v349 = vpop.f32.mrf.mxu0
    %v350 = vadd.f32 0.0, %v349
    %v351 = vpop.f32.mrf.mxu0
    %352 = vmatprep.mubr.f32.mxu0 %v220
    %353 = vmatmul.mubr.f32.gmra.mxu0 %v219
    %v354 = vpop.f32.mrf.mxu0
    %v355 = vadd.f32 0.0, %v354
    %v356 = vpop.f32.mrf.mxu0
    %357 = vdwg.mxu0
    %358 = vst [vmem:[#allocation5] sm:$0xff] %v320
    %359 = vst [vmem:[#allocation5 + $0x8] sm:$0xff] %v325
    %360 = vst [vmem:[#allocation5 + $0x10] sm:$0xff] %v330
    %361 = vst [vmem:[#allocation5 + $0x18] sm:$0xff] %v335
    %362 = vst [vmem:[#allocation5 + $0x20] sm:$0xff] %v340
    %363 = vst [vmem:[#allocation5 + $0x28] sm:$0xff] %v345
    %364 = vst [vmem:[#allocation5 + $0x30] sm:$0xff] %v350
    %365 = vst [vmem:[#allocation5 + $0x38] sm:$0xff] %v355
    // Predicated region
    $region14: #{tpu_custom_call.1} parent=1 // pred_check
      _
    $region15: #{tpu_custom_call.1} parent=1 // pred_check_branch
      %367 = sbr.rel (0) target = $region17
    $region16: #{tpu_custom_call.1} parent=1 // pred_region
      %s369 = ssub.s32 1024, 1024
      %370 = vsyncadd [#allocation4], %s369
      %s371 = sshll.u32 [#allocation5], 4
      %s372 = int_to_ptr.vmem [resolvable:$true] %s371
      %377 = dma.vmem_to_hbm [thread:$0]  %s372, 1024, %s2, [#allocation4], 128, 128, 8
    $region17: #{tpu_custom_call.1} parent=1 // pred_fallthru
      _
    // Predicated region
    $region18: #{tpu_custom_call.1} parent=1 // pred_check
      _
    $region19: #{tpu_custom_call.1} parent=1 // pred_check_branch
      %379 = sbr.rel (0) target = $region21
    $region20: #{tpu_custom_call.1} parent=1 // pred_region
      %380 = dma.done [#allocation4], 1024
    $region21: #{tpu_custom_call.1} parent=1 // pred_fallthru
      _
    %381 = vsyncpa [#allocation3], 1
    %382 = vsyncpa [#allocation4], 1

</llo_original>
